<compile_context>
chip_gen: v7x
topology: tpu7x:2x2x1
jax: 0.10.0
libtpu: 0.0.40
codegen_flags: <defaults>
</compile_context>

<pallas_src>
import jax
import jax.numpy as jnp
from jax.experimental import pallas as pl
from jax.experimental.pallas import tpu as pltpu


# ----------------------------- fused kernel ----------------------------------
def channel_attn_kernel(x_ref, w1t_ref, w2t_ref, o_ref):
    # x_ref:   (1, C, HW)  one batch element, channels on sublanes, HW on lanes
    # w1t_ref: (C, C4)     fc1 weight, pre-transposed to (in, out)
    # w2t_ref: (C4, C)     fc2 weight, pre-transposed to (in, out)
    # o_ref:   (1, 1, C)
    x = x_ref[0]                                            # (C, HW)

    # AdaptiveMaxPool2d(1): global max over spatial (lane-axis reduce).
    pooled = jnp.max(x, axis=-1, keepdims=True)             # (C, 1)

    # fc1 (1x1 conv, no bias): matvec as broadcast-mul + sublane reduce (VPU+XLU).
    h = jnp.sum(w1t_ref[...] * pooled, axis=0, keepdims=True)   # (1, C4)
    h = jnp.maximum(h, 0.0)                                 # ReLU

    # fc2 (1x1 conv, no bias): (1, C4) @ (C4, C) on the MXU, f32 accumulation.
    o = jnp.dot(h, w2t_ref[...], preferred_element_type=jnp.float32)  # (1, C)

    o_ref[0] = jax.nn.sigmoid(o)


# -------------------------------- wrapper -------------------------------------
def channel_attention(x, fc1_w, fc2_w):
    """x: (B, C, H, W); fc1_w: (C//4, C, 1, 1); fc2_w: (C, C//4, 1, 1)."""
    B, C, H, W = x.shape
    C4 = fc1_w.shape[0]
    assert C4 == C // 4 and fc2_w.shape[:2] == (C, C4)
    HW = H * W

    x3 = x.reshape(B, C, HW)              # contiguous reshape (no data movement)
    w1t = fc1_w.reshape(C4, C).T          # (C, C4) one-time param layout transform
    w2t = fc2_w.reshape(C, C4).T          # (C4, C)

    out = pl.pallas_call(
        channel_attn_kernel,
        out_shape=jax.ShapeDtypeStruct((B, 1, C), jnp.float32),
        grid=(B,),
        in_specs=[
            pl.BlockSpec((1, C, HW), lambda b: (b, 0, 0)),
            pl.BlockSpec((C, C4), lambda b: (0, 0)),
            pl.BlockSpec((C4, C), lambda b: (0, 0)),
        ],
        out_specs=pl.BlockSpec((1, 1, C), lambda b: (b, 0, 0)),
        compiler_params=pltpu.CompilerParams(dimension_semantics=("parallel",)),
    )(x3, w1t, w2t)

    return out.reshape(B, C, 1, 1)


# --------------------------- pure-JAX reference --------------------------------
def reference(x, fc1_w, fc2_w):
    B, C, H, W = x.shape
    C4 = fc1_w.shape[0]
    pooled = jnp.max(x.reshape(B, C, H * W), axis=-1)            # (B, C)
    h = jnp.maximum(pooled @ fc1_w.reshape(C4, C).T, 0.0)        # (B, C4)
    o = jax.nn.sigmoid(h @ fc2_w.reshape(C, C4).T)               # (B, C)
    return o.reshape(B, C, 1, 1)


if __name__ == "__main__":
    B, C, H, W = 2, 32, 16, 16            # in_planes = 32

    key = jax.random.PRNGKey(0)
    k1, k2, k3 = jax.random.split(key, 3)
    fc1_w = 0.1 * jax.random.normal(k1, (C // 4, C, 1, 1), jnp.float32)
    fc2_w = 0.1 * jax.random.normal(k2, (C, C // 4, 1, 1), jnp.float32)
    x = jax.random.normal(k3, (B, C, H, W), jnp.float32)

    out = channel_attention(x, fc1_w, fc2_w)
    out = jax.block_until_ready(out)

    ref = reference(x, fc1_w, fc2_w)
    err = float(jnp.max(jnp.abs(out - ref)))
    assert out.shape == (B, C, 1, 1) and err < 1e-5, f"max abs err = {err}"
    print("KERNEL_OK")
</pallas_src>

<mosaic_0001>
module attributes {stable_mosaic.version = 11 : i64} {
  func.func @channel_attn_kernel(%arg0: i32, %arg1: memref<1x32x256xf32, #tpu.memory_space<vmem>>, %arg2: memref<32x8xf32, #tpu.memory_space<vmem>>, %arg3: memref<8x32xf32, #tpu.memory_space<vmem>>, %arg4: memref<1x1x32xf32, #tpu.memory_space<vmem>>) attributes {dimension_semantics = [#tpu.dimension_semantics<parallel>], iteration_bounds = array<i64: 2>, scalar_prefetch = 0 : i64, scratch_operands = 0 : i64, tpu.core_type = #tpu.core_type<tc>, window_params = [{transform_indices = @transform_0, window_bounds = array<i64: 1, 32, 256>}, {pipeline_mode = #tpu.pipeline_mode<synchronous>, transform_indices = @transform_1, window_bounds = array<i64: 32, 8>}, {pipeline_mode = #tpu.pipeline_mode<synchronous>, transform_indices = @transform_2, window_bounds = array<i64: 8, 32>}, {transform_indices = @transform_3, window_bounds = array<i64: 1, 1, 32>}]} {
    %c0 = arith.constant 0 : index
    %c0_0 = arith.constant 0 : index
    %c0_1 = arith.constant 0 : index
    %0 = vector.load %arg1[%c0, %c0_0, %c0_1] : memref<1x32x256xf32, #tpu.memory_space<vmem>>, vector<1x32x256xf32>
    %1 = vector.shape_cast %0 : vector<1x32x256xf32> to vector<32x256xf32>
    %cst = arith.constant dense<0xFF800000> : vector<32xf32>
    %2 = vector.multi_reduction <maximumf>, %1, %cst [1] : vector<32x256xf32> to vector<32xf32>
    %3 = vector.shape_cast %2 : vector<32xf32> to vector<32x1xf32>
    %c0_2 = arith.constant 0 : index
    %c0_3 = arith.constant 0 : index
    %4 = vector.load %arg2[%c0_2, %c0_3] : memref<32x8xf32, #tpu.memory_space<vmem>>, vector<32x8xf32>
    %5 = vector.broadcast %3 : vector<32x1xf32> to vector<32x8xf32>
    %6 = arith.mulf %4, %5 : vector<32x8xf32>
    %cst_4 = arith.constant dense<0.000000e+00> : vector<8xf32>
    %7 = vector.multi_reduction <add>, %6, %cst_4 [0] : vector<32x8xf32> to vector<8xf32>
    %8 = vector.shape_cast %7 : vector<8xf32> to vector<1x8xf32>
    %cst_5 = arith.constant 0.000000e+00 : f32
    %9 = vector.broadcast %cst_5 : f32 to vector<1x8xf32>
    %10 = arith.maximumf %8, %9 : vector<1x8xf32>
    %c0_6 = arith.constant 0 : index
    %c0_7 = arith.constant 0 : index
    %11 = vector.load %arg3[%c0_6, %c0_7] : memref<8x32xf32, #tpu.memory_space<vmem>>, vector<8x32xf32>
    %cst_8 = arith.constant dense<0.000000e+00> : vector<1x32xf32>
    %12 = tpu.matmul %10, %11, %cst_8 {dimension_numbers = #tpu.dot_dimension_numbers<[1], [0], [0], [1], [0, 0, 1, 1], [], []>} : vector<1x8xf32>, vector<8x32xf32>, vector<1x32xf32> -> vector<1x32xf32>
    %13 = arith.negf %12 : vector<1x32xf32>
    %14 = math.exp %13 : vector<1x32xf32>
    %cst_9 = arith.constant 1.000000e+00 : f32
    %15 = vector.broadcast %cst_9 : f32 to vector<1x32xf32>
    %16 = arith.addf %15, %14 : vector<1x32xf32>
    %17 = arith.divf %15, %16 : vector<1x32xf32>
    %c0_10 = arith.constant 0 : index
    %c0_11 = arith.constant 0 : index
    %c0_12 = arith.constant 0 : index
    %18 = vector.load %arg4[%c0_10, %c0_11, %c0_12] : memref<1x1x32xf32, #tpu.memory_space<vmem>>, vector<1x1x32xf32>
    %19 = vector.shape_cast %18 : vector<1x1x32xf32> to vector<1x32xf32>
    %20 = vector.shape_cast %17 : vector<1x32xf32> to vector<1x1x32xf32>
    tpu.vector_store %arg4[%c0_10, %c0_11, %c0_12], %20 {strides = array<i32>} : memref<1x1x32xf32, #tpu.memory_space<vmem>>, vector<1x1x32xf32>,
    return
  }
  func.func @transform_0(%arg0: i32) -> (i32, i32, i32) {
    %c0_i32 = arith.constant 0 : i32
    %c0_i32_0 = arith.constant 0 : i32
    %c0_i32_1 = arith.constant 0 : i32
    return %arg0, %c0_i32, %c0_i32_0 : i32, i32, i32
  }
  func.func @transform_1(%arg0: i32) -> (i32, i32) {
    %c0_i32 = arith.constant 0 : i32
    %c0_i32_0 = arith.constant 0 : i32
    %c0_i32_1 = arith.constant 0 : i32
    return %c0_i32, %c0_i32_0 : i32, i32
  }
  func.func @transform_2(%arg0: i32) -> (i32, i32) {
    %c0_i32 = arith.constant 0 : i32
    %c0_i32_0 = arith.constant 0 : i32
    %c0_i32_1 = arith.constant 0 : i32
    return %c0_i32, %c0_i32_0 : i32, i32
  }
  func.func @transform_3(%arg0: i32) -> (i32, i32, i32) {
    %c0_i32 = arith.constant 0 : i32
    %c0_i32_0 = arith.constant 0 : i32
    %c0_i32_1 = arith.constant 0 : i32
    return %arg0, %c0_i32, %c0_i32_0 : i32, i32, i32
  }
}

</mosaic_0001>

<llo_original>
// kernel: tpu_custom_call.1
$region0: #{tpu_custom_call.1}
  #allocation0 [shape = 'u32[]', space=smem, size = 0x4, offset = 0x4, fixed_abs, tag = 'smem constant byte address 0x4 - core index']
  #allocation1 [shape = 'u32[144,128]{1,0:T(1,128)}', space=vmem, size = 0x12000, scoped, tag = 'internal scratch']
  %s0 = inlined_call_operand.hbm [shape: f32[2,32,256], index: 0, kind: input, shape index: {}]
  %s1 = inlined_call_operand.vmem [shape: f32[32,8], index: 1, kind: input, shape index: {}]
  %s2 = inlined_call_operand.vmem [shape: f32[8,32], index: 2, kind: input, shape index: {}]
  %s3 = inlined_call_operand.hbm [shape: f32[2,1,32], index: 3, kind: output, shape index: {}]
  %s4 = sld [smem:[#allocation0]]
  $region49: #{tpu_custom_call.1} parent=0
    _
  %s6 = ssub.s32 1, %s4
  %s7 = scalar_select 0, %s6, %s4
  $region1: #{tpu_custom_call.1} parent=0
    #allocation2 [shape = 'u8[65536]{0}', space=vmem, size = 0x10000, scoped, tag = 'input window, operand 0']
    #allocation3 [shape = 's32[2]{0}', space=sflag, size = 0x8, scoped, tag = 'scoped memory for tpu_custom_call.1']
    #allocation4 [shape = 's32[2]{0}', space=sflag, size = 0x8, scoped, tag = 'scoped memory for tpu_custom_call.1']
    #allocation5 [shape = 'u8[1024]{0}', space=vmem, size = 0x400, scoped, tag = 'output window, operand 0']
    %8 = vsyncpa [#allocation3], 0
    %s9 = scalar_lea.sflag [#allocation3], 1
    %10 = vsyncpa %s9, 0
    %11 = vsyncpa [#allocation4], 0
    %s12 = scalar_lea.sflag [#allocation4], 1
    %13 = vsyncpa %s12, 0
    loop: start=0, step=1, limit=4
    $region2: #{tpu_custom_call.1} parent=1 // loop_pre_header
      _
    $region3: #{tpu_custom_call.1} parent=1 // loop_header
      %s15 = sphi 0, %s19
      %p16 = scmp.ge.s32.totalorder %s15, 4
      %s25 = sphi 0, %s27
      %s28 = sphi 0, %s25
      %s29 = sphi 0, %s28
      %s45 = sphi 0, %s29
      %s49 = sphi 0, %s49
      %s51 = sphi 0, %s49
      %s52 = sphi 0, %s51
      %s66 = sphi 0, %s52
      %s70 = sphi 0, %s70
      %s72 = sphi 0, %s70
      %s73 = sphi 0, %s72
      %s87 = sphi 0, %s73
      %s93 = sphi 0, %s95
      %s96 = sphi 0, %s93
      %s97 = sphi 0, %s96
      %s113 = sphi 0, %s97
    $region4: #{tpu_custom_call.1} parent=1 // loop_header_branch
      %18 = sbr.rel (%p16) target = $region8
    $region5: #{tpu_custom_call.1} parent=1 // loop_body
      %s20 = ssub.s32 %s15, 1
      %s21 = ssub.s32 %s15, 2
      %s22 = sadd.s32 %s15, 1
      %s23 = ssub.s32 %s15, %s22
      %p24 = scmp.eq.s32.totalorder %s23, 0
      %s26 = sadd.s32 %s25, 1
      %s27 = scalar_select %p24, %s25, %s26
      %p30 = pneg %p24
      %p31 = scmp.eq.s32.totalorder %s15, 1
      %p32 = por %p30, %p31
      %p33 = scmp.ne.s32.totalorder %s25, %s28
      %p34 = scmp.eq.s32.totalorder %s15, 0
      %p35 = por %p33, %p34
      %p36 = scmp.ne.s32.totalorder %s25, %s28
      %p37 = scmp.eq.s32.totalorder %s20, 1
      %p38 = por %p36, %p37
      %p39 = scmp.ne.s32.totalorder %s28, %s29
      %p40 = scmp.eq.s32.totalorder %s20, 0
      %p41 = por %p39, %p40
      %p42 = scmp.ne.s32.totalorder %s28, %s29
      %p43 = scmp.eq.s32.totalorder %s21, 1
      %p44 = por %p42, %p43
      %p46 = scmp.ne.s32.totalorder %s29, %s45
      %p47 = scmp.eq.s32.totalorder %s21, 0
      %p48 = por %p46, %p47
      %s50 = sadd.s32 %s49, 1
      %p53 = scmp.eq.s32.totalorder %s15, 1
      %p54 = scmp.ne.s32.totalorder %s49, %s51
      %p55 = scmp.eq.s32.totalorder %s15, 0
      %p56 = por %p54, %p55
      %p57 = scmp.ne.s32.totalorder %s49, %s51
      %p58 = scmp.eq.s32.totalorder %s20, 1
      %p59 = por %p57, %p58
      %p60 = scmp.ne.s32.totalorder %s51, %s52
      %p61 = scmp.eq.s32.totalorder %s20, 0
      %p62 = por %p60, %p61
      %p63 = scmp.ne.s32.totalorder %s51, %s52
      %p64 = scmp.eq.s32.totalorder %s21, 1
      %p65 = por %p63, %p64
      %p67 = scmp.ne.s32.totalorder %s52, %s66
      %p68 = scmp.eq.s32.totalorder %s21, 0
      %p69 = por %p67, %p68
      %s71 = sadd.s32 %s70, 1
      %p74 = scmp.eq.s32.totalorder %s15, 1
      %p75 = scmp.ne.s32.totalorder %s70, %s72
      %p76 = scmp.eq.s32.totalorder %s15, 0
      %p77 = por %p75, %p76
      %p78 = scmp.ne.s32.totalorder %s70, %s72
      %p79 = scmp.eq.s32.totalorder %s20, 1
      %p80 = por %p78, %p79
      %p81 = scmp.ne.s32.totalorder %s72, %s73
      %p82 = scmp.eq.s32.totalorder %s20, 0
      %p83 = por %p81, %p82
      %p84 = scmp.ne.s32.totalorder %s72, %s73
      %p85 = scmp.eq.s32.totalorder %s21, 1
      %p86 = por %p84, %p85
      %p88 = scmp.ne.s32.totalorder %s73, %s87
      %p89 = scmp.eq.s32.totalorder %s21, 0
      %p90 = por %p88, %p89
      %s91 = ssub.s32 %s15, %s22
      %p92 = scmp.eq.s32.totalorder %s91, 0
      %s94 = sadd.s32 %s93, 1
      %s95 = scalar_select %p92, %s93, %s94
      %p98 = pneg %p92
      %p99 = scmp.eq.s32.totalorder %s15, 1
      %p100 = por %p98, %p99
      %p101 = scmp.ne.s32.totalorder %s93, %s96
      %p102 = scmp.eq.s32.totalorder %s15, 0
      %p103 = por %p101, %p102
      %p104 = scmp.ne.s32.totalorder %s93, %s96
      %p105 = scmp.eq.s32.totalorder %s20, 1
      %p106 = por %p104, %p105
      %p107 = scmp.ne.s32.totalorder %s96, %s97
      %p108 = scmp.eq.s32.totalorder %s20, 0
      %p109 = por %p107, %p108
      %p110 = scmp.ne.s32.totalorder %s96, %s97
      %p111 = scmp.eq.s32.totalorder %s21, 1
      %p112 = por %p110, %p111
      %p114 = scmp.ne.s32.totalorder %s97, %s113
      %p115 = scmp.eq.s32.totalorder %s21, 0
      %p116 = por %p114, %p115
      %p117 = scmp.le.s32.totalorder 1, %s15
      %p118 = scmp.lt.s32.totalorder %s15, 3
      %p119 = pnand %p117, %p118
      %p120 = pneg %p119
      // Predicated region
      $region9: #{tpu_custom_call.1} parent=5 // pred_check
        _
      $region10: #{tpu_custom_call.1} parent=5 // pred_check_branch
        %122 = sbr.rel (%p119) target = $region12
      $region11: #{tpu_custom_call.1} parent=5 // pred_region
        %s123 = ssub.s32 %s15, 1
        // Predicated region
        $region13: #{tpu_custom_call.1} parent=11 // pred_check
          %p124 = pneg %p62
        $region14: #{tpu_custom_call.1} parent=11 // pred_check_branch
          %126 = sbr.rel (%p124) target = $region16
        $region15: #{tpu_custom_call.1} parent=11 // pred_region
          _
        $region16: #{tpu_custom_call.1} parent=11 // pred_fallthru
          _
        // Predicated region
        $region17: #{tpu_custom_call.1} parent=11 // pred_check
          %p127 = pneg %p83
        $region18: #{tpu_custom_call.1} parent=11 // pred_check_branch
          %129 = sbr.rel (%p127) target = $region20
        $region19: #{tpu_custom_call.1} parent=11 // pred_region
          _
        $region20: #{tpu_custom_call.1} parent=11 // pred_fallthru
          _
      $region12: #{tpu_custom_call.1} parent=5 // pred_fallthru
        _
      %p130 = scmp.lt.s32.totalorder %s15, 2
      // Predicated region
      $region21: #{tpu_custom_call.1} parent=5 // pred_check
        %p131 = pneg %p130
      $region22: #{tpu_custom_call.1} parent=5 // pred_check_branch
        %133 = sbr.rel (%p131) target = $region24
      $region23: #{tpu_custom_call.1} parent=5 // pred_region
        // Predicated region
        $region25: #{tpu_custom_call.1} parent=23 // pred_check
          %p134 = pneg %p35
        $region26: #{tpu_custom_call.1} parent=23 // pred_check_branch
          %136 = sbr.rel (%p134) target = $region28
        $region27: #{tpu_custom_call.1} parent=23 // pred_region
          %s137 = sand.u32 %s25, 1
          %s138 = scalar_lea.sflag [#allocation3], %s137
          %s139 = sand.u32 %s25, 1
          %s140 = smul.addr %s139, 64
          %s141 = scalar_lea.vmem [#allocation2], %s140
          %s143 = ssub.s32 1024, 1024
          %144 = vsyncadd %s138, %s143
          %s145 = smul.addr %s15, 8
          %s146 = smul.addr %s145, 128
          %s147 = scalar_lea.hbm %s0, %s146
          %s148 = sshll.u32 %s141, 4
          %s149 = int_to_ptr.vmem [resolvable:$true] %s148
          %154 = dma.hbm_to_vmem [thread:$0]  %s147, 1024, %s149, %s138, 256, 256, 16
        $region28: #{tpu_custom_call.1} parent=23 // pred_fallthru
          _
      $region24: #{tpu_custom_call.1} parent=5 // pred_fallthru
        _
      %p155 = scmp.le.s32.totalorder 1, %s15
      %p156 = scmp.lt.s32.totalorder %s15, 3
      %p157 = pnand %p155, %p156
      %p158 = pneg %p157
      // Predicated region
      $region29: #{tpu_custom_call.1} parent=5 // pred_check
        _
      $region30: #{tpu_custom_call.1} parent=5 // pred_check_branch
        %160 = sbr.rel (%p157) target = $region32
      $region31: #{tpu_custom_call.1} parent=5 // pred_region
        %s161 = ssub.s32 %s15, 1
        %s162 = sand.u32 %s28, 1
        %s163 = scalar_lea.sflag [#allocation3], %s162
        %s164 = sand.u32 %s28, 1
        %s165 = smul.addr %s164, 64
        %s166 = scalar_lea.vmem [#allocation2], %s165
        // Predicated region
        $region33: #{tpu_custom_call.1} parent=31 // pred_check
          %p167 = pneg %p41
        $region34: #{tpu_custom_call.1} parent=31 // pred_check_branch
          %169 = sbr.rel (%p167) target = $region36
        $region35: #{tpu_custom_call.1} parent=31 // pred_region
          %170 = dma.done %s163, 1024
        $region36: #{tpu_custom_call.1} parent=31 // pred_fallthru
          _
        %s171 = sand.u32 %s28, 1
        %s172 = scalar_lea.sflag [#allocation3], %s171
        %s173 = sand.u32 %s28, 1
        %s174 = smul.addr %s173, 64
        %s175 = scalar_lea.vmem [#allocation2], %s174
        %p176 = pneg %p41
        %p177 = pneg %p38
        %p178 = pneg %p62
        %p179 = pneg %p59
        %p180 = pneg %p83
        %p181 = pneg %p80
        %p182 = pneg %p109
        %p183 = pneg %p106
        %s184 = sand.u32 %s96, 1
        %s185 = scalar_lea.sflag [#allocation4], %s184
        %s186 = sand.u32 %s96, 1
        %s187 = scalar_lea.vmem [#allocation5], %s186
        %v188 = vld [vmem:[%s166] sm:$0xff]
        %v189 = vld [vmem:[%s166 + $0x8] sm:$0xff]
        %v190 = vld [vmem:[%s166 + $0x10] sm:$0xff]
        %v191 = vld [vmem:[%s166 + $0x18] sm:$0xff]
        %v192 = vld [vmem:[%s166 + $0x20] sm:$0xff]
        %v193 = vld [vmem:[%s166 + $0x28] sm:$0xff]
        %v194 = vld [vmem:[%s166 + $0x30] sm:$0xff]
        %v195 = vld [vmem:[%s166 + $0x38] sm:$0xff]
        %v196 = vmax.f32 %v188, %v189
        %197 = vmax.xlane.f32.xlu0 %v196
        %v198 = vpop.xlane.xlu0 %197
        %v199 = vmax.f32 %v190, %v191
        %200 = vmax.xlane.f32.xlu0 %v199
        %v201 = vpop.xlane.xlu0 %200
        %v202 = vmax.f32 %v192, %v193
        %203 = vmax.xlane.f32.xlu0 %v202
        %v204 = vpop.xlane.xlu0 %203
        %v205 = vmax.f32 %v194, %v195
        %206 = vmax.xlane.f32.xlu0 %v205
        %v207 = vpop.xlane.xlu0 %206
        %v208 = vld [vmem:[%s1] sm:$0xff]
        %v209 = vld [vmem:[%s1 + $0x8] sm:$0xff]
        %v210 = vld [vmem:[%s1 + $0x10] sm:$0xff]
        %v211 = vld [vmem:[%s1 + $0x18] sm:$0xff]
        %v212 = vmul.f32 %v208, %v198
        %v213 = vmul.f32 %v209, %v201
        %v214 = vmul.f32 %v210, %v204
        %v215 = vmul.f32 %v211, %v207
        %vm216 = vcmask 64512
        %v217 = vsel %vm216, %v212, 0.0
        %v218 = vsel %vm216, %v213, 0.0
        %v219 = vadd.f32 %v217, %v218
        %v220 = vsel %vm216, %v214, 0.0
        %v221 = vadd.f32 %v219, %v220
        %v222 = vsel %vm216, %v215, 0.0
        %v223 = vadd.f32 %v221, %v222
        %v224 = vrot.slane %v223, 4
        %v225 = vadd.f32 %v223, %v224
        %v226 = vrot.slane %v225, 2
        %v227 = vadd.f32 %v225, %v226
        %v228 = vrot.slane %v227, 1
        %v229 = vadd.f32 %v227, %v228
        %v230 = vmax.f32 %v229, 0.0
        %v231 = vld [vmem:[%s2] sm:$0xff]
        %v233 = vsel %vm216, %v230, 0
        %235 = vmatprep.subr.mxu0 0.0
        %236 = vmatpush1.msra.mxu0 %v231
        %237 = vmatprep.subr.mxu0 0.0
        %238 = vmatpush1.msra.mxu0 0.0
        %239 = vmatprep.subr.mxu0 0.0
        %240 = vmatpush1.msra.mxu0 0.0
        %241 = vmatprep.subr.mxu0 0.0
        %242 = vmatpush1.msra.mxu0 0.0
        %243 = vmatprep.subr.mxu0 0.0
        %244 = vmatpush1.msra.mxu0 0.0
        %245 = vmatprep.subr.mxu0 0.0
        %246 = vmatpush1.msra.mxu0 0.0
        %247 = vmatprep.subr.mxu0 0.0
        %248 = vmatpush1.msra.mxu0 0.0
        %249 = vmatprep.subr.mxu0 0.0
        %250 = vmatpush1.msra.mxu0 0.0
        %251 = vmatprep.subr.mxu0 0.0
        %252 = vmatpush1.msra.mxu0 0.0
        %253 = vmatprep.subr.mxu0 0.0
        %254 = vmatpush1.msra.mxu0 0.0
        %255 = vmatprep.subr.mxu0 0.0
        %256 = vmatpush1.msra.mxu0 0.0
        %257 = vmatprep.subr.mxu0 0.0
        %258 = vmatpush1.msra.mxu0 0.0
        %259 = vmatprep.subr.mxu0 0.0
        %260 = vmatpush1.msra.mxu0 0.0
        %261 = vmatprep.subr.mxu0 0.0
        %262 = vmatpush1.msra.mxu0 0.0
        %263 = vmatprep.subr.mxu0 0.0
        %264 = vmatpush1.msra.mxu0 0.0
        %265 = vmatprep.subr.mxu0 0.0
        %266 = vmatpush1.msra.mxu0 0.0
        %267 = vmatprep.subr.mxu0 0.0
        %268 = vmatpush1.msra.mxu0 0.0
        %269 = vmatprep.subr.mxu0 0.0
        %270 = vmatpush1.msra.mxu0 0.0
        %271 = vmatprep.subr.mxu0 0.0
        %272 = vmatpush1.msra.mxu0 0.0
        %273 = vmatprep.subr.mxu0 0.0
        %274 = vmatpush1.msra.mxu0 0.0
        %275 = vmatprep.subr.mxu0 0.0
        %276 = vmatpush1.msra.mxu0 0.0
        %277 = vmatprep.subr.mxu0 0.0
        %278 = vmatpush1.msra.mxu0 0.0
        %279 = vmatprep.subr.mxu0 0.0
        %280 = vmatpush1.msra.mxu0 0.0
        %281 = vmatprep.subr.mxu0 0.0
        %282 = vmatpush1.msra.mxu0 0.0
        %283 = vmatprep.subr.mxu0 0.0
        %284 = vmatpush1.msra.mxu0 0.0
        %285 = vmatprep.subr.mxu0 0.0
        %286 = vmatpush1.msra.mxu0 0.0
        %287 = vmatprep.subr.mxu0 0.0
        %288 = vmatpush1.msra.mxu0 0.0
        %289 = vmatprep.subr.mxu0 0.0
        %290 = vmatpush1.msra.mxu0 0.0
        %291 = vmatprep.subr.mxu0 0.0
        %292 = vmatpush1.msra.mxu0 0.0
        %293 = vmatprep.subr.mxu0 0.0
        %294 = vmatpush1.msra.mxu0 0.0
        %295 = vmatprep.subr.mxu0 0.0
        %296 = vmatpush1.msra.mxu0 0.0
        %297 = vmatprep.subr.mxu0 0.0
        %298 = vmatpush1.msra.mxu0 0.0
        %299 = vmatprep.mubr.f32.mxu0 0.0
        %300 = vmatmul.mubr.f32.gmra.mrb[0].mxu0 %v233
        %v301 = vpop.f32.mrb[0].mxu0
        %v302 = vadd.f32 0.0, %v301
        %v303 = vpop.f32.mrb[0].mxu0
        %304 = vdwg.mxu0
        %v305 = vxor.u32 %v302, 2147483648
        %v306 = vmul.f32 %v305, 1.442695
        %v307 = vpow.pop %v306
        %v308 = vadd.f32 %v307, 1.0
        %v309 = vrcp.pop %v308
        %v310 = vmul.f32 1.0, %v309
        %vm311 = vcmask 253952
        %312 = vst.msk [vmem:[%s187] sm:$0x1] %vm311, %v310
        %s313 = sand.u32 %s96, 1
        %s314 = scalar_lea.sflag [#allocation4], %s313
        %s315 = sand.u32 %s96, 1
        %s316 = scalar_lea.vmem [#allocation5], %s315
        // Predicated region
        $region37: #{tpu_custom_call.1} parent=31 // pred_check
          %p317 = pneg %p106
        $region38: #{tpu_custom_call.1} parent=31 // pred_check_branch
          %319 = sbr.rel (%p317) target = $region40
        $region39: #{tpu_custom_call.1} parent=31 // pred_region
          %s321 = ssub.s32 16, 16
          %322 = vsyncadd %s314, %s321
          %s323 = smul.addr %s20, 16
          %s324 = scalar_lea.hbm %s3, %s323
          %s326 = sshll.u32 %s316, 4
          %s327 = int_to_ptr.vmem [resolvable:$true] %s326
          %329 = dma.vmem_to_hbm [thread:$0]  %s327, 16, %s324, %s314
        $region40: #{tpu_custom_call.1} parent=31 // pred_fallthru
          _
      $region32: #{tpu_custom_call.1} parent=5 // pred_fallthru
        _
      %p330 = scmp.le.s32.totalorder 2, %s15
      // Predicated region
      $region41: #{tpu_custom_call.1} parent=5 // pred_check
        %p331 = pneg %p330
      $region42: #{tpu_custom_call.1} parent=5 // pred_check_branch
        %333 = sbr.rel (%p331) target = $region44
      $region43: #{tpu_custom_call.1} parent=5 // pred_region
        %s334 = ssub.s32 %s15, 2
        // Predicated region
        $region45: #{tpu_custom_call.1} parent=43 // pred_check
          %p335 = pneg %p112
        $region46: #{tpu_custom_call.1} parent=43 // pred_check_branch
          %337 = sbr.rel (%p335) target = $region48
        $region47: #{tpu_custom_call.1} parent=43 // pred_region
          %s338 = sand.u32 %s97, 1
          %s339 = scalar_lea.sflag [#allocation4], %s338
          %s340 = sand.u32 %s97, 1
          %s341 = scalar_lea.vmem [#allocation5], %s340
          %342 = dma.done %s339, 16
        $region48: #{tpu_custom_call.1} parent=43 // pred_fallthru
          _
      $region44: #{tpu_custom_call.1} parent=5 // pred_fallthru
        _
    $region6: #{tpu_custom_call.1} parent=1 // loop_footer
      %s19 = sadd.s32 1, %s15
    $region7: #{tpu_custom_call.1} parent=1 // loop_footer_branch
      %14 = sbr.rel target = $region3
    $region8: #{tpu_custom_call.1} parent=1 // loop_exit
      _
    %343 = vsyncpa [#allocation3], 1
    %s344 = scalar_lea.sflag [#allocation3], 1
    %345 = vsyncpa %s344, 1
    %346 = vsyncpa [#allocation4], 1
    %s347 = scalar_lea.sflag [#allocation4], 1
    %348 = vsyncpa %s347, 1

</llo_original>
